<compile_context>
chip_gen: v5e
topology: v5e:2x2
jax: 0.10.0
libtpu: 0.0.40
codegen_flags: <defaults>
</compile_context>

<pallas_src>
import functools

import jax
import jax.numpy as jnp
from jax.experimental import pallas as pl
from jax.experimental.pallas import tpu as pltpu


_VMEM_LIMIT = 48 * 1024 * 1024   # > v5e 16 MiB scoped default, < v7x 64 MiB physical


def _round_up(x, m):
    return ((x + m - 1) // m) * m


def _row_tile(m, cap=512):
    # Big row tiles amortize per-grid-step overhead; never exceed the
    # (8-rounded) problem size for tiny shapes.
    return min(cap, _round_up(m, 8))


def _cparams(*sem):
    return pltpu.CompilerParams(dimension_semantics=sem,
                                vmem_limit_bytes=_VMEM_LIMIT)


# ---------------------------------------------------------------------------
# Kernels
# ---------------------------------------------------------------------------

def _linear_kernel(x_ref, w_ref, b_ref, o_ref):
    acc = jnp.dot(x_ref[...], w_ref[...], preferred_element_type=jnp.float32)
    o_ref[...] = (acc + b_ref[...]).astype(o_ref.dtype)


def linear_op(x2d, w, b, out_dtype=jnp.bfloat16):
    """(M, K) @ (K, N) + (N,); bf16 operands, f32 accumulate."""
    M, K = x2d.shape
    N = w.shape[1]
    tm = _row_tile(M)
    tn = N if N <= 512 else 512
    return pl.pallas_call(
        _linear_kernel,
        out_shape=jax.ShapeDtypeStruct((M, N), out_dtype),
        grid=(pl.cdiv(M, tm), pl.cdiv(N, tn)),
        in_specs=[
            pl.BlockSpec((tm, K), lambda i, j: (i, 0)),
            pl.BlockSpec((K, tn), lambda i, j: (0, j)),
            pl.BlockSpec((1, tn), lambda i, j: (0, j)),
        ],
        out_specs=pl.BlockSpec((tm, tn), lambda i, j: (i, j)),
        compiler_params=_cparams("parallel", "parallel"),
    )(x2d, w, b.reshape(1, N))


def _prenet_kernel(mel_ref, w1_ref, b1_ref, w2_ref, b2_ref, pos_ref, o_ref):
    x = mel_ref[0].astype(jnp.bfloat16)
    h = jnp.dot(x, w1_ref[...], preferred_element_type=jnp.float32) + b1_ref[...]
    h = jnp.maximum(h, 0.0).astype(jnp.bfloat16)
    h = jnp.dot(h, w2_ref[...], preferred_element_type=jnp.float32) + b2_ref[...]
    h = jnp.maximum(h, 0.0)
    o_ref[0] = (h + pos_ref[0]).astype(o_ref.dtype)


def prenet_op(mel, w1, b1, w2, b2, pos):
    """DecoderPreNet (linear-relu-linear-relu) + positional add, fully fused."""
    B, T, Cm = mel.shape
    E = w1.shape[1]
    tt = _row_tile(T)
    return pl.pallas_call(
        _prenet_kernel,
        out_shape=jax.ShapeDtypeStruct((B, T, E), jnp.bfloat16),
        grid=(B, pl.cdiv(T, tt)),
        in_specs=[
            pl.BlockSpec((1, tt, Cm), lambda b, i: (b, i, 0)),
            pl.BlockSpec((Cm, E), lambda b, i: (0, 0)),
            pl.BlockSpec((1, E), lambda b, i: (0, 0)),
            pl.BlockSpec((E, E), lambda b, i: (0, 0)),
            pl.BlockSpec((1, E), lambda b, i: (0, 0)),
            pl.BlockSpec((1, tt, E), lambda b, i: (0, i, 0)),
        ],
        out_specs=pl.BlockSpec((1, tt, E), lambda b, i: (b, i, 0)),
        compiler_params=_cparams("parallel", "parallel"),
    )(mel, w1, b1.reshape(1, E), w2, b2.reshape(1, E), pos)


def _attn_block_kernel(q_ref, kv_ref, wq_ref, bq_ref, wkv_ref, bkv_ref,
                       woq_ref, woa_ref, bo_ref, g_ref, be_ref, o_ref,
                       *, heads, depth, eps):
    f32, bf16 = jnp.float32, jnp.bfloat16
    E = heads * depth
    q_in = q_ref[0]                      # (tq, E) bf16 -- also the residual
    kv_in = kv_ref[0]                    # (lk, E) bf16
    qp = jnp.dot(q_in, wq_ref[...], preferred_element_type=f32) + bq_ref[...]
    kvp = jnp.dot(kv_in, wkv_ref[...], preferred_element_type=f32) + bkv_ref[...]
    qp_b, kvp_b = qp.astype(bf16), kvp.astype(bf16)
    woa = woa_ref[...]

    # fc_out(cat([q_proj, attn])) == q_proj @ wo_q + sum_h attn_h @ wo_a[h-block]
    acc = jnp.dot(qp_b, woq_ref[...], preferred_element_type=f32)
    acc = acc + bo_ref[...] + q_in.astype(f32)

    # TODO(synk): flash-style Lk tiling (online softmax) for very long encoder
    # sequences; full-Lk KV in VMEM is fine for typical TTS lengths.
    for h in range(heads):
        lo = h * depth
        qh = qp_b[:, lo:lo + depth]
        kh = kvp_b[:, lo:lo + depth]
        vh = kvp_b[:, E + lo:E + lo + depth]
        e = jax.lax.dot_general(qh, kh, (((1,), (1,)), ((), ())),
                                preferred_element_type=f32)
        e = e * (2.0 / depth)            # reference: energy / (depth ** 1 / 2)
        e = e - jnp.max(e, axis=-1, keepdims=True)
        p = jnp.exp(e)
        p = p * pl.reciprocal(jnp.sum(p, axis=-1, keepdims=True), approx=True)
        attn_h = jnp.dot(p.astype(bf16), vh, preferred_element_type=f32)
        acc = acc + jnp.dot(attn_h.astype(bf16), woa[lo:lo + depth, :],
                            preferred_element_type=f32)

    mu = jnp.mean(acc, axis=-1, keepdims=True)
    var = jnp.mean((acc - mu) ** 2, axis=-1, keepdims=True)
    y = (acc - mu) * jax.lax.rsqrt(var + eps)
    o_ref[0] = (y * g_ref[...] + be_ref[...]).astype(o_ref.dtype)


def attention_block_op(p, query, kv_src, ln_g, ln_b, heads, depth, eps=1e-5):
    """SelfAttention(query, kv, kv) + residual(query) + LayerNorm, ONE kernel.
    Per-head Linear(depth,depth) projections are fused block-diagonal (E,E) /
    (E,2E) matmuls; fc_out(cat) is split so no concat is needed.  Masks are
    ignored to reproduce the reference's no-op masked_fill."""
    B, Lq, E = query.shape
    Lk = kv_src.shape[1]
    tq = _row_tile(Lq, cap=256)
    return pl.pallas_call(
        functools.partial(_attn_block_kernel, heads=heads, depth=depth, eps=eps),
        out_shape=jax.ShapeDtypeStruct((B, Lq, E), jnp.bfloat16),
        grid=(B, pl.cdiv(Lq, tq)),
        in_specs=[
            pl.BlockSpec((1, tq, E), lambda b, i: (b, i, 0)),
            pl.BlockSpec((1, Lk, E), lambda b, i: (b, 0, 0)),
            pl.BlockSpec((E, E), lambda b, i: (0, 0)),
            pl.BlockSpec((1, E), lambda b, i: (0, 0)),
            pl.BlockSpec((E, 2 * E), lambda b, i: (0, 0)),
            pl.BlockSpec((1, 2 * E), lambda b, i: (0, 0)),
            pl.BlockSpec((E, E), lambda b, i: (0, 0)),
            pl.BlockSpec((E, E), lambda b, i: (0, 0)),
            pl.BlockSpec((1, E), lambda b, i: (0, 0)),
            pl.BlockSpec((1, E), lambda b, i: (0, 0)),
            pl.BlockSpec((1, E), lambda b, i: (0, 0)),
        ],
        out_specs=pl.BlockSpec((1, tq, E), lambda b, i: (b, i, 0)),
        compiler_params=_cparams("parallel", "parallel"),
    )(query, kv_src, p["wq"], p["bq"].reshape(1, E), p["wkv"],
      p["bkv"].reshape(1, 2 * E), p["wo_q"], p["wo_a"], p["bo"].reshape(1, E),
      ln_g.reshape(1, E), ln_b.reshape(1, E))


def _ffn_ln_kernel(x_ref, w1_ref, b1_ref, w2_ref, b2_ref, g_ref, be_ref, o_ref,
                   *, eps):
    x = x_ref[...]                       # (tm, E) bf16 -- also the residual
    h = jnp.dot(x, w1_ref[...], preferred_element_type=jnp.float32) + b1_ref[...]
    h = jax.nn.gelu(h, approximate=False)        # torch nn.GELU default (erf)
    acc = jnp.dot(h.astype(jnp.bfloat16), w2_ref[...],
                  preferred_element_type=jnp.float32)
    acc = acc + b2_ref[...] + x.astype(jnp.float32)
    mu = jnp.mean(acc, axis=-1, keepdims=True)
    var = jnp.mean((acc - mu) ** 2, axis=-1, keepdims=True)
    y = (acc - mu) * jax.lax.rsqrt(var + eps)
    o_ref[...] = (y * g_ref[...] + be_ref[...]).astype(o_ref.dtype)


def ffn_ln_op(x2d, w1, b1, w2, b2, gamma, beta, eps=1e-5):
    """LayerNorm(GELU(x@w1+b1)@w2+b2 + x): the k=1-conv FFN fully fused (the
    wide hidden activation never leaves VMEM)."""
    M, E = x2d.shape
    F = w1.shape[1]
    tm = _row_tile(M)
    return pl.pallas_call(
        functools.partial(_ffn_ln_kernel, eps=eps),
        out_shape=jax.ShapeDtypeStruct((M, E), jnp.bfloat16),
        grid=(pl.cdiv(M, tm),),
        in_specs=[
            pl.BlockSpec((tm, E), lambda i: (i, 0)),
            pl.BlockSpec((E, F), lambda i: (0, 0)),
            pl.BlockSpec((1, F), lambda i: (0, 0)),
            pl.BlockSpec((F, E), lambda i: (0, 0)),
            pl.BlockSpec((1, E), lambda i: (0, 0)),
            pl.BlockSpec((1, E), lambda i: (0, 0)),
            pl.BlockSpec((1, E), lambda i: (0, 0)),
        ],
        out_specs=pl.BlockSpec((tm, E), lambda i: (i, 0)),
        compiler_params=_cparams("parallel"),
    )(x2d, w1, b1.reshape(1, F), w2, b2.reshape(1, E),
      gamma.reshape(1, E), beta.reshape(1, E))


def _causal_conv_kernel(prev_ref, cur_ref, w_ref, b_ref, *rest, act, has_res):
    if has_res:
        res_ref, o_ref = rest
    else:
        (o_ref,) = rest
    tt, cout = o_ref.shape[1], o_ref.shape[2]
    first = pl.program_id(1) == 0
    halo = prev_ref[0, tt - 4:tt, :]                     # tail of previous T tile
    halo = jnp.where(first, jnp.zeros_like(halo), halo)  # causal zeros at t < 0
    xext = jnp.concatenate([halo, cur_ref[0]], axis=0)   # (tt+4, Cin), in VMEM
    acc = jnp.zeros((tt, cout), jnp.float32) + b_ref[...]
    for k in range(5):                                   # 5 shifted taps
        acc = acc + jnp.dot(xext[k:k + tt, :], w_ref[k],
                            preferred_element_type=jnp.float32)
    if act == "tanh":
        acc = jnp.tanh(acc)
    if has_res:
        acc = acc + res_ref[0].astype(jnp.float32)
    o_ref[0] = acc.astype(o_ref.dtype)


def causal_conv_op(x, w, b, act="none", residual=None, out_dtype=jnp.bfloat16):
    """Causal Conv1d(k=5) == Conv1d(padding=4)[..., :-4] on (B, T, C_in).
    No HBM pre-padding: the 4-row causal halo is taken from the previous T tile
    (zeroed on the first tile) inside the kernel.  Optional fused tanh / residual."""
    B, T, Cin = x.shape
    Cout = w.shape[2]
    tt = _row_tile(T, cap=256)
    args = [x, x, w, b.reshape(1, Cout)]
    in_specs = [
        pl.BlockSpec((1, tt, Cin), lambda bb, i: (bb, jnp.maximum(i - 1, 0), 0)),
        pl.BlockSpec((1, tt, Cin), lambda bb, i: (bb, i, 0)),
        pl.BlockSpec((5, Cin, Cout), lambda bb, i: (0, 0, 0)),
        pl.BlockSpec((1, Cout), lambda bb, i: (0, 0)),
    ]
    if residual is not None:
        args.append(residual)
        in_specs.append(pl.BlockSpec((1, tt, Cout), lambda bb, i: (bb, i, 0)))
    return pl.pallas_call(
        functools.partial(_causal_conv_kernel, act=act,
                          has_res=residual is not None),
        out_shape=jax.ShapeDtypeStruct((B, T, Cout), out_dtype),
        grid=(B, pl.cdiv(T, tt)),
        in_specs=in_specs,
        out_specs=pl.BlockSpec((1, tt, Cout), lambda bb, i: (bb, i, 0)),
        compiler_params=_cparams("parallel", "parallel"),
    )(*args)


# ---------------------------------------------------------------------------
# Module glue
# ---------------------------------------------------------------------------

def decoder_forward(params, mel, encoder_output, src_mask=None, causal_mask=None):
    # masks accepted but unused (reproduces the reference's no-op masked_fill)
    B, T, mel_dims = mel.shape
    heads, depth = params["heads"], params["depth"]
    E = heads * depth

    # DecoderPreNet + positional embedding (dropout == identity at inference)
    x = prenet_op(mel, params["pre_w1"], params["pre_b1"],
                  params["pre_w2"], params["pre_b2"], params["pos"])
    enc = encoder_output.astype(jnp.bfloat16)

    for lp in params["layers"]:
        # DecoderBlock: causal self-attention + residual + LN (mask is a no-op)
        x = attention_block_op(lp["self_attn"], x, x, lp["ln_g"], lp["ln_b"],
                               heads, depth)
        tb = lp["tblock"]
        # TransformerBlock: cross attention + residual + LN
        x = attention_block_op(tb["attn"], x, enc, tb["ln1_g"], tb["ln1_b"],
                               heads, depth)
        # feed-forward (k=1 convs == linears) + residual + LN, fully fused
        x = ffn_ln_op(x.reshape(B * T, E), tb["ff_w1"], tb["ff_b1"],
                      tb["ff_w2"], tb["ff_b2"], tb["ln2_g"], tb["ln2_b"]
                      ).reshape(B, T, E)

    # fused, lane-dense (128-wide) mel_linear + stop_linear projection
    proj = linear_op(x.reshape(B * T, E), params["head_w"], params["head_b"])
    proj3 = proj.reshape(B, T, -1)                       # (B, T, 128k) bf16
    mel_lin = proj3[:, :, :mel_dims].astype(jnp.float32)
    stop = proj3[:, :, mel_dims:mel_dims + 1].astype(jnp.float32)

    # PostNet: causal k=5 convs (eval-mode BN folded, tanh fused).  The first
    # conv consumes the padded head slab directly (zero weight rows kill the
    # stop / pad lanes); the last conv is lane-dense (128-wide output) and
    # fuses the `postnet + mel_linear` residual.
    y = causal_conv_op(proj3, params["pn_w1"], params["pn_b1"], act="tanh")
    for w, b in zip(params["pn_ws"], params["pn_bs"]):
        y = causal_conv_op(y, w, b, act="tanh")
    out_pad = causal_conv_op(y, params["pn_w5"], params["pn_b5"], act="none",
                             residual=proj3, out_dtype=jnp.float32)
    out = out_pad[:, :, :mel_dims]
    return out, mel_lin, stop


# ---------------------------------------------------------------------------
# Deterministic parameter initialization (shapes follow the torch __init__)
# ---------------------------------------------------------------------------

def init_params(key, mel_dims, hidden_dims, heads, max_len, num_layers,
                forward_expansion):
    depth = hidden_dims // heads
    E = hidden_dims
    keys = iter(jax.random.split(key, 512))
    bf16 = jnp.bfloat16

    def lin(fi, fo):
        k1, k2 = next(keys), next(keys)
        bound = 1.0 / (fi ** 0.5)
        return (jax.random.uniform(k1, (fi, fo), jnp.float32, -bound, bound),
                jax.random.uniform(k2, (fo,), jnp.float32, -bound, bound))

    def conv5(ci, co):
        k1, k2 = next(keys), next(keys)
        bound = 1.0 / ((ci * 5) ** 0.5)
        w = jax.random.uniform(k1, (5, ci, co), jnp.float32, -bound, bound)
        b = jax.random.uniform(k2, (co,), jnp.float32, -bound, bound)
        return w, b

    def bn_fold(w, b, co, eps=1e-5):
        # eval-mode BatchNorm (running_mean=0, running_var=1) folded into conv
        kg, kb = next(keys), next(keys)
        gamma = 1.0 + 0.1 * jax.random.normal(kg, (co,), jnp.float32)
        beta = 0.1 * jax.random.normal(kb, (co,), jnp.float32)
        scale = gamma / jnp.sqrt(jnp.ones((co,), jnp.float32) + eps)
        return w * scale[None, None, :], b * scale + beta

    eye = jnp.eye(heads, dtype=jnp.float32)

    def attn_params():
        wq, bq = lin(depth, depth)
        wk, bk = lin(depth, depth)
        wv, bv = lin(depth, depth)
        wo, bo = lin(depth * heads * 2, E)
        # per-head Linear(depth, depth) shared across heads == block-diagonal
        # (E, E) matmul; K/V fused side-by-side -> one (E, 2E) matmul.
        wq_f = jnp.kron(eye, wq)
        wkv_f = jnp.concatenate([jnp.kron(eye, wk), jnp.kron(eye, wv)], axis=1)
        bq_f = jnp.tile(bq, heads)
        bkv_f = jnp.concatenate([jnp.tile(bk, heads), jnp.tile(bv, heads)])
        # fc_out(cat([q, attn])) == q @ wo[:E] + attn @ wo[E:]
        return dict(wq=wq_f.astype(bf16), bq=bq_f,
                    wkv=wkv_f.astype(bf16), bkv=bkv_f,
                    wo_q=wo[:E].astype(bf16), wo_a=wo[E:].astype(bf16), bo=bo)

    params = {"heads": heads, "depth": depth}
    params["pos"] = 0.02 * jax.random.normal(next(keys), (1, max_len, E),
                                             jnp.float32)
    w, b = lin(mel_dims, E)
    params["pre_w1"], params["pre_b1"] = w.astype(bf16), b
    w, b = lin(E, E)
    params["pre_w2"], params["pre_b2"] = w.astype(bf16), b

    layers = []
    for _ in range(num_layers):
        ff_w1, ff_b1 = lin(E, E * forward_expansion)
        ff_w2, ff_b2 = lin(E * forward_expansion, E)
        tblock = dict(attn=attn_params(),
                      ln1_g=jnp.ones((E,), jnp.float32),
                      ln1_b=jnp.zeros((E,), jnp.float32),
                      ln2_g=jnp.ones((E,), jnp.float32),
                      ln2_b=jnp.zeros((E,), jnp.float32),
                      ff_w1=ff_w1.astype(bf16), ff_b1=ff_b1,
                      ff_w2=ff_w2.astype(bf16), ff_b2=ff_b2)
        layers.append(dict(self_attn=attn_params(),
                           ln_g=jnp.ones((E,), jnp.float32),
                           ln_b=jnp.zeros((E,), jnp.float32),
                           tblock=tblock))
    params["layers"] = layers

    # mel_linear (E->mel) and stop_linear (E->1) fused into one lane-dense
    # 128-wide projection (sliced back afterwards).
    mel_w, mel_b = lin(E, mel_dims)
    stop_w, stop_b = lin(E, 1)
    n_head = _round_up(mel_dims + 1, 128)
    head_w = jnp.zeros((E, n_head), jnp.float32)
    head_w = head_w.at[:, :mel_dims].set(mel_w)
    head_w = head_w.at[:, mel_dims:mel_dims + 1].set(stop_w)
    head_b = jnp.zeros((n_head,), jnp.float32)
    head_b = head_b.at[:mel_dims].set(mel_b)
    head_b = head_b.at[mel_dims:mel_dims + 1].set(stop_b)
    params["head_w"], params["head_b"] = head_w.astype(bf16), head_b

    # PostNet conv1: input channels padded to n_head (zero rows -> the stop /
    # pad lanes of the fed projection contribute nothing).
    w1, b1 = conv5(mel_dims, E)
    w1, b1 = bn_fold(w1, b1, E)
    w1p = jnp.zeros((5, n_head, E), jnp.float32).at[:, :mel_dims, :].set(w1)
    params["pn_w1"], params["pn_b1"] = w1p.astype(bf16), b1
    pn_ws, pn_bs = [], []
    for _ in range(3):
        w, b = conv5(E, E)
        w, b = bn_fold(w, b, E)
        pn_ws.append(w.astype(bf16))
        pn_bs.append(b)
    params["pn_ws"], params["pn_bs"] = pn_ws, pn_bs
    # PostNet conv5: output channels padded to n_head for lane-dense stores.
    w5, b5 = conv5(E, mel_dims)
    w5p = jnp.zeros((5, E, n_head), jnp.float32).at[:, :, :mel_dims].set(w5)
    b5p = jnp.zeros((n_head,), jnp.float32).at[:mel_dims].set(b5)
    params["pn_w5"], params["pn_b5"] = w5p.astype(bf16), b5p
    return params


# ---------------------------------------------------------------------------

if __name__ == "__main__":
    mel_dims, hidden_dims, heads = 16, 32, 2
    max_len, num_layers, forward_expansion = 16, 2, 2
    B, T, S = 2, 8, 8

    params = init_params(jax.random.PRNGKey(42), mel_dims, hidden_dims, heads,
                         max_len, num_layers, forward_expansion)

    key = jax.random.PRNGKey(0)
    k1, k2 = jax.random.split(key)
    mel = jax.random.normal(k1, (B, T, mel_dims), jnp.float32)
    encoder_output = jax.random.normal(k2, (B, S, hidden_dims), jnp.float32)

    out, mel_linear, stop_linear = decoder_forward(params, mel, encoder_output,
                                                   src_mask=None,
                                                   causal_mask=None)
    jax.block_until_ready((out, mel_linear, stop_linear))
    assert out.shape == (B, T, mel_dims)
    assert mel_linear.shape == (B, T, mel_dims)
    assert stop_linear.shape == (B, T, 1)
    assert out.dtype == jnp.float32
    print("KERNEL_OK")
</pallas_src>

<mosaic_0001>
module attributes {stable_mosaic.version = 11 : i64} {
  func.func @_prenet_kernel(%arg0: i32, %arg1: i32, %arg2: memref<1x8x16xf32, #tpu.memory_space<vmem>>, %arg3: memref<16x32xbf16, #tpu.memory_space<vmem>>, %arg4: memref<1x32xf32, #tpu.memory_space<vmem>>, %arg5: memref<32x32xbf16, #tpu.memory_space<vmem>>, %arg6: memref<1x32xf32, #tpu.memory_space<vmem>>, %arg7: memref<1x8x32xf32, #tpu.memory_space<vmem>>, %arg8: memref<1x8x32xbf16, #tpu.memory_space<vmem>>) attributes {dimension_semantics = [#tpu.dimension_semantics<parallel>, #tpu.dimension_semantics<parallel>], iteration_bounds = array<i64: 2, 1>, scalar_prefetch = 0 : i64, scratch_operands = 0 : i64, tpu.core_type = #tpu.core_type<tc>, window_params = [{transform_indices = @transform_0, window_bounds = array<i64: 1, 8, 16>}, {pipeline_mode = #tpu.pipeline_mode<synchronous>, transform_indices = @transform_1, window_bounds = array<i64: 16, 32>}, {pipeline_mode = #tpu.pipeline_mode<synchronous>, transform_indices = @transform_2, window_bounds = array<i64: 1, 32>}, {pipeline_mode = #tpu.pipeline_mode<synchronous>, transform_indices = @transform_3, window_bounds = array<i64: 32, 32>}, {pipeline_mode = #tpu.pipeline_mode<synchronous>, transform_indices = @transform_4, window_bounds = array<i64: 1, 32>}, {transform_indices = @transform_5, window_bounds = array<i64: 1, 8, 32>}, {transform_indices = @transform_6, window_bounds = array<i64: 1, 8, 32>}]} {
    %c0 = arith.constant 0 : index
    %c0_0 = arith.constant 0 : index
    %c0_1 = arith.constant 0 : index
    %0 = vector.load %arg2[%c0, %c0_0, %c0_1] : memref<1x8x16xf32, #tpu.memory_space<vmem>>, vector<1x8x16xf32>
    %1 = vector.shape_cast %0 : vector<1x8x16xf32> to vector<8x16xf32>
    %2 = arith.truncf %1 : vector<8x16xf32> to vector<8x16xbf16>
    %c0_2 = arith.constant 0 : index
    %c0_3 = arith.constant 0 : index
    %3 = vector.load %arg3[%c0_2, %c0_3] : memref<16x32xbf16, #tpu.memory_space<vmem>>, vector<16x32xbf16>
    %cst = arith.constant dense<0.000000e+00> : vector<8x32xf32>
    %4 = tpu.matmul %2, %3, %cst {dimension_numbers = #tpu.dot_dimension_numbers<[1], [0], [0], [1], [0, 0, 1, 1], [], []>} : vector<8x16xbf16>, vector<16x32xbf16>, vector<8x32xf32> -> vector<8x32xf32>
    %c0_4 = arith.constant 0 : index
    %c0_5 = arith.constant 0 : index
    %5 = vector.load %arg4[%c0_4, %c0_5] : memref<1x32xf32, #tpu.memory_space<vmem>>, vector<1x32xf32>
    %6 = vector.broadcast %5 : vector<1x32xf32> to vector<8x32xf32>
    %7 = arith.addf %4, %6 : vector<8x32xf32>
    %cst_6 = arith.constant 0.000000e+00 : f32
    %8 = vector.broadcast %cst_6 : f32 to vector<8x32xf32>
    %9 = arith.maximumf %7, %8 : vector<8x32xf32>
    %10 = arith.truncf %9 : vector<8x32xf32> to vector<8x32xbf16>
    %c0_7 = arith.constant 0 : index
    %c0_8 = arith.constant 0 : index
    %11 = vector.load %arg5[%c0_7, %c0_8] : memref<32x32xbf16, #tpu.memory_space<vmem>>, vector<32x32xbf16>
    %cst_9 = arith.constant dense<0.000000e+00> : vector<8x32xf32>
    %12 = tpu.matmul %10, %11, %cst_9 {dimension_numbers = #tpu.dot_dimension_numbers<[1], [0], [0], [1], [0, 0, 1, 1], [], []>} : vector<8x32xbf16>, vector<32x32xbf16>, vector<8x32xf32> -> vector<8x32xf32>
    %c0_10 = arith.constant 0 : index
    %c0_11 = arith.constant 0 : index
    %13 = vector.load %arg6[%c0_10, %c0_11] : memref<1x32xf32, #tpu.memory_space<vmem>>, vector<1x32xf32>
    %14 = vector.broadcast %13 : vector<1x32xf32> to vector<8x32xf32>
    %15 = arith.addf %12, %14 : vector<8x32xf32>
    %cst_12 = arith.constant 0.000000e+00 : f32
    %16 = vector.broadcast %cst_12 : f32 to vector<8x32xf32>
    %17 = arith.maximumf %15, %16 : vector<8x32xf32>
    %c0_13 = arith.constant 0 : index
    %c0_14 = arith.constant 0 : index
    %c0_15 = arith.constant 0 : index
    %18 = vector.load %arg7[%c0_13, %c0_14, %c0_15] : memref<1x8x32xf32, #tpu.memory_space<vmem>>, vector<1x8x32xf32>
    %19 = vector.shape_cast %18 : vector<1x8x32xf32> to vector<8x32xf32>
    %20 = arith.addf %17, %19 : vector<8x32xf32>
    %21 = arith.truncf %20 : vector<8x32xf32> to vector<8x32xbf16>
    %c0_16 = arith.constant 0 : index
    %c0_17 = arith.constant 0 : index
    %c0_18 = arith.constant 0 : index
    %22 = vector.load %arg8[%c0_16, %c0_17, %c0_18] : memref<1x8x32xbf16, #tpu.memory_space<vmem>>, vector<1x8x32xbf16>
    %23 = vector.shape_cast %22 : vector<1x8x32xbf16> to vector<8x32xbf16>
    %24 = vector.shape_cast %21 : vector<8x32xbf16> to vector<1x8x32xbf16>
    tpu.vector_store %arg8[%c0_16, %c0_17, %c0_18], %24 {strides = array<i32>} : memref<1x8x32xbf16, #tpu.memory_space<vmem>>, vector<1x8x32xbf16>,
    return
  }
  func.func @transform_0(%arg0: i32, %arg1: i32) -> (i32, i32, i32) {
    %c0_i32 = arith.constant 0 : i32
    %c0_i32_0 = arith.constant 0 : i32
    return %arg0, %arg1, %c0_i32 : i32, i32, i32
  }
  func.func @transform_1(%arg0: i32, %arg1: i32) -> (i32, i32) {
    %c0_i32 = arith.constant 0 : i32
    %c0_i32_0 = arith.constant 0 : i32
    %c0_i32_1 = arith.constant 0 : i32
    return %c0_i32, %c0_i32_0 : i32, i32
  }
  func.func @transform_2(%arg0: i32, %arg1: i32) -> (i32, i32) {
    %c0_i32 = arith.constant 0 : i32
    %c0_i32_0 = arith.constant 0 : i32
    %c0_i32_1 = arith.constant 0 : i32
    return %c0_i32, %c0_i32_0 : i32, i32
  }
  func.func @transform_3(%arg0: i32, %arg1: i32) -> (i32, i32) {
    %c0_i32 = arith.constant 0 : i32
    %c0_i32_0 = arith.constant 0 : i32
    %c0_i32_1 = arith.constant 0 : i32
    return %c0_i32, %c0_i32_0 : i32, i32
  }
  func.func @transform_4(%arg0: i32, %arg1: i32) -> (i32, i32) {
    %c0_i32 = arith.constant 0 : i32
    %c0_i32_0 = arith.constant 0 : i32
    %c0_i32_1 = arith.constant 0 : i32
    return %c0_i32, %c0_i32_0 : i32, i32
  }
  func.func @transform_5(%arg0: i32, %arg1: i32) -> (i32, i32, i32) {
    %c0_i32 = arith.constant 0 : i32
    %c0_i32_0 = arith.constant 0 : i32
    %c0_i32_1 = arith.constant 0 : i32
    return %c0_i32, %arg1, %c0_i32_0 : i32, i32, i32
  }
  func.func @transform_6(%arg0: i32, %arg1: i32) -> (i32, i32, i32) {
    %c0_i32 = arith.constant 0 : i32
    %c0_i32_0 = arith.constant 0 : i32
    return %arg0, %arg1, %c0_i32 : i32, i32, i32
  }
}

</mosaic_0001>

<llo_original>
// kernel: tpu_custom_call.1
$region0: #{tpu_custom_call.1}
  #allocation0 [shape = 'u32[]', space=smem, size = 0x4, offset = 0x4, fixed_abs, tag = 'smem constant byte address 0x4 - core index']
  #allocation1 [shape = 'u32[72,128]{1,0:T(1,128)}', space=vmem, size = 0x9000, scoped, tag = 'internal scratch']
  %s0 = inlined_call_operand.hbm [shape: f32[2,8,16], index: 0, kind: input, shape index: {}]
  %s1 = inlined_call_operand.hbm [shape: bf16[16,32], index: 1, kind: input, shape index: {}]
  %s2 = inlined_call_operand.vmem [shape: f32[1,32], index: 2, kind: input, shape index: {}]
  %s3 = inlined_call_operand.hbm [shape: bf16[32,32], index: 3, kind: input, shape index: {}]
  %s4 = inlined_call_operand.vmem [shape: f32[1,32], index: 4, kind: input, shape index: {}]
  %s5 = inlined_call_operand.hbm [shape: f32[1,16,32], index: 5, kind: input, shape index: {}]
  %s6 = inlined_call_operand.hbm [shape: bf16[2,8,32], index: 6, kind: output, shape index: {}]
  %s7 = sld [smem:[#allocation0]]
  $region73: #{tpu_custom_call.1} parent=0
    _
  %s9 = ssub.s32 1, %s7
  %s10 = scalar_select 0, %s9, %s7
  $region1: #{tpu_custom_call.1} parent=0
    #allocation2 [shape = 'u8[8192]{0}', space=vmem, size = 0x2000, scoped, tag = 'input window, operand 0']
    #allocation3 [shape = 's32[2]{0}', space=sflag, size = 0x8, scoped, tag = 'scoped memory for tpu_custom_call.1']
    #allocation4 [shape = 's32[2]{0}', space=sflag, size = 0x8, scoped, tag = 'scoped memory for tpu_custom_call.1']
    #allocation5 [shape = 'u8[4096]{0}', space=vmem, size = 0x1000, scoped, tag = 'input window, operand 1, single buffered']
    #allocation6 [shape = 's32[1]{0}', space=sflag, size = 0x4, scoped, tag = 'scoped memory for tpu_custom_call.1']
    #allocation7 [shape = 'u8[8192]{0}', space=vmem, size = 0x2000, scoped, tag = 'input window, operand 3, single buffered']
    #allocation8 [shape = 'u8[4096]{0}', space=vmem, size = 0x1000, scoped, tag = 'input window, operand 5, single buffered']
    #allocation9 [shape = 's32[1]{0}', space=sflag, size = 0x4, scoped, tag = 'scoped memory for tpu_custom_call.1']
    #allocation10 [shape = 'u8[4096]{0}', space=vmem, size = 0x1000, scoped, tag = 'output window, operand 0']
    %11 = vsyncpa [#allocation3], 0
    %s12 = scalar_lea.sflag [#allocation3], 1
    %13 = vsyncpa %s12, 0
    %14 = vsyncpa [#allocation6], 0
    %15 = vsyncpa [#allocation9], 0
    %16 = vsyncpa [#allocation4], 0
    %s17 = scalar_lea.sflag [#allocation4], 1
    %18 = vsyncpa %s17, 0
    loop: start=0, step=1, limit=4
    $region2: #{tpu_custom_call.1} parent=1 // loop_pre_header
      _
    $region3: #{tpu_custom_call.1} parent=1 // loop_header
      %s20 = sphi 0, %s24
      %p21 = scmp.ge.s32.totalorder %s20, 4
      %s27 = sphi 0, %s39
      %s28 = sphi 0, %s35
      %s29 = sphi 0, %s27
      %s30 = sphi 0, %s28
      %s31 = sphi 0, %s29
      %s32 = sphi 0, %s30
      %s44 = sphi 0, %s46
      %s47 = sphi 0, %s44
      %s48 = sphi 0, %s47
      %s64 = sphi 0, %s48
      %s68 = sphi 0, %s68
      %s70 = sphi 0, %s68
      %s71 = sphi 0, %s70
      %s85 = sphi 0, %s71
      %s89 = sphi 0, %s89
      %s91 = sphi 0, %s89
      %s92 = sphi 0, %s91
      %s106 = sphi 0, %s92
      %s110 = sphi 0, %s110
      %s112 = sphi 0, %s110
      %s113 = sphi 0, %s112
      %s127 = sphi 0, %s113
      %s131 = sphi 0, %s131
      %s133 = sphi 0, %s131
      %s134 = sphi 0, %s133
      %s148 = sphi 0, %s134
      %s154 = sphi 0, %s156
      %s157 = sphi 0, %s154
      %s158 = sphi 0, %s157
      %s174 = sphi 0, %s158
      %s182 = sphi 0, %s184
      %s185 = sphi 0, %s182
      %s186 = sphi 0, %s185
      %s202 = sphi 0, %s186
    $region4: #{tpu_custom_call.1} parent=1 // loop_header_branch
      %23 = sbr.rel (%p21) target = $region8
    $region5: #{tpu_custom_call.1} parent=1 // loop_body
      %s25 = ssub.s32 %s20, 1
      %s26 = ssub.s32 %s20, 2
      %s33 = sadd.s32 1, %s28
      %p34 = scmp.ge.s32.totalorder %s33, 1
      %s35 = scalar_select %p34, 0, %s33
      %s36 = sadd.s32 1, %s27
      %s37 = scalar_select %p34, %s36, %s27
      %p38 = scmp.ge.s32.totalorder %s37, 2
      %s39 = scalar_select %p38, 0, %s37
      %s40 = ssub.s32 %s27, %s39
      %s41 = ssub.s32 %s28, %s35
      %s42 = sor.u32 %s40, %s41
      %p43 = scmp.eq.s32.totalorder %s42, 0
      %s45 = sadd.s32 %s44, 1
      %s46 = scalar_select %p43, %s44, %s45
      %p49 = pneg %p43
      %p50 = scmp.eq.s32.totalorder %s20, 1
      %p51 = por %p49, %p50
      %p52 = scmp.ne.s32.totalorder %s44, %s47
      %p53 = scmp.eq.s32.totalorder %s20, 0
      %p54 = por %p52, %p53
      %p55 = scmp.ne.s32.totalorder %s44, %s47
      %p56 = scmp.eq.s32.totalorder %s25, 1
      %p57 = por %p55, %p56
      %p58 = scmp.ne.s32.totalorder %s47, %s48
      %p59 = scmp.eq.s32.totalorder %s25, 0
      %p60 = por %p58, %p59
      %p61 = scmp.ne.s32.totalorder %s47, %s48
      %p62 = scmp.eq.s32.totalorder %s26, 1
      %p63 = por %p61, %p62
      %p65 = scmp.ne.s32.totalorder %s48, %s64
      %p66 = scmp.eq.s32.totalorder %s26, 0
      %p67 = por %p65, %p66
      %s69 = sadd.s32 %s68, 1
      %p72 = scmp.eq.s32.totalorder %s20, 1
      %p73 = scmp.ne.s32.totalorder %s68, %s70
      %p74 = scmp.eq.s32.totalorder %s20, 0
      %p75 = por %p73, %p74
      %p76 = scmp.ne.s32.totalorder %s68, %s70
      %p77 = scmp.eq.s32.totalorder %s25, 1
      %p78 = por %p76, %p77
      %p79 = scmp.ne.s32.totalorder %s70, %s71
      %p80 = scmp.eq.s32.totalorder %s25, 0
      %p81 = por %p79, %p80
      %p82 = scmp.ne.s32.totalorder %s70, %s71
      %p83 = scmp.eq.s32.totalorder %s26, 1
      %p84 = por %p82, %p83
      %p86 = scmp.ne.s32.totalorder %s71, %s85
      %p87 = scmp.eq.s32.totalorder %s26, 0
      %p88 = por %p86, %p87
      %s90 = sadd.s32 %s89, 1
      %p93 = scmp.eq.s32.totalorder %s20, 1
      %p94 = scmp.ne.s32.totalorder %s89, %s91
      %p95 = scmp.eq.s32.totalorder %s20, 0
      %p96 = por %p94, %p95
      %p97 = scmp.ne.s32.totalorder %s89, %s91
      %p98 = scmp.eq.s32.totalorder %s25, 1
      %p99 = por %p97, %p98
      %p100 = scmp.ne.s32.totalorder %s91, %s92
      %p101 = scmp.eq.s32.totalorder %s25, 0
      %p102 = por %p100, %p101
      %p103 = scmp.ne.s32.totalorder %s91, %s92
      %p104 = scmp.eq.s32.totalorder %s26, 1
      %p105 = por %p103, %p104
      %p107 = scmp.ne.s32.totalorder %s92, %s106
      %p108 = scmp.eq.s32.totalorder %s26, 0
      %p109 = por %p107, %p108
      %s111 = sadd.s32 %s110, 1
      %p114 = scmp.eq.s32.totalorder %s20, 1
      %p115 = scmp.ne.s32.totalorder %s110, %s112
      %p116 = scmp.eq.s32.totalorder %s20, 0
      %p117 = por %p115, %p116
      %p118 = scmp.ne.s32.totalorder %s110, %s112
      %p119 = scmp.eq.s32.totalorder %s25, 1
      %p120 = por %p118, %p119
      %p121 = scmp.ne.s32.totalorder %s112, %s113
      %p122 = scmp.eq.s32.totalorder %s25, 0
      %p123 = por %p121, %p122
      %p124 = scmp.ne.s32.totalorder %s112, %s113
      %p125 = scmp.eq.s32.totalorder %s26, 1
      %p126 = por %p124, %p125
      %p128 = scmp.ne.s32.totalorder %s113, %s127
      %p129 = scmp.eq.s32.totalorder %s26, 0
      %p130 = por %p128, %p129
      %s132 = sadd.s32 %s131, 1
      %p135 = scmp.eq.s32.totalorder %s20, 1
      %p136 = scmp.ne.s32.totalorder %s131, %s133
      %p137 = scmp.eq.s32.totalorder %s20, 0
      %p138 = por %p136, %p137
      %p139 = scmp.ne.s32.totalorder %s131, %s133
      %p140 = scmp.eq.s32.totalorder %s25, 1
      %p141 = por %p139, %p140
      %p142 = scmp.ne.s32.totalorder %s133, %s134
      %p143 = scmp.eq.s32.totalorder %s25, 0
      %p144 = por %p142, %p143
      %p145 = scmp.ne.s32.totalorder %s133, %s134
      %p146 = scmp.eq.s32.totalorder %s26, 1
      %p147 = por %p145, %p146
      %p149 = scmp.ne.s32.totalorder %s134, %s148
      %p150 = scmp.eq.s32.totalorder %s26, 0
      %p151 = por %p149, %p150
      %s152 = ssub.s32 %s28, %s35
      %p153 = scmp.eq.s32.totalorder %s152, 0
      %s155 = sadd.s32 %s154, 1
      %s156 = scalar_select %p153, %s154, %s155
      %p159 = pneg %p153
      %p160 = scmp.eq.s32.totalorder %s20, 1
      %p161 = por %p159, %p160
      %p162 = scmp.ne.s32.totalorder %s154, %s157
      %p163 = scmp.eq.s32.totalorder %s20, 0
      %p164 = por %p162, %p163
      %p165 = scmp.ne.s32.totalorder %s154, %s157
      %p166 = scmp.eq.s32.totalorder %s25, 1
      %p167 = por %p165, %p166
      %p168 = scmp.ne.s32.totalorder %s157, %s158
      %p169 = scmp.eq.s32.totalorder %s25, 0
      %p170 = por %p168, %p169
      %p171 = scmp.ne.s32.totalorder %s157, %s158
      %p172 = scmp.eq.s32.totalorder %s26, 1
      %p173 = por %p171, %p172
      %p175 = scmp.ne.s32.totalorder %s158, %s174
      %p176 = scmp.eq.s32.totalorder %s26, 0
      %p177 = por %p175, %p176
      %s178 = ssub.s32 %s27, %s39
      %s179 = ssub.s32 %s28, %s35
      %s180 = sor.u32 %s178, %s179
      %p181 = scmp.eq.s32.totalorder %s180, 0
      %s183 = sadd.s32 %s182, 1
      %s184 = scalar_select %p181, %s182, %s183
      %p187 = pneg %p181
      %p188 = scmp.eq.s32.totalorder %s20, 1
      %p189 = por %p187, %p188
      %p190 = scmp.ne.s32.totalorder %s182, %s185
      %p191 = scmp.eq.s32.totalorder %s20, 0
      %p192 = por %p190, %p191
      %p193 = scmp.ne.s32.totalorder %s182, %s185
      %p194 = scmp.eq.s32.totalorder %s25, 1
      %p195 = por %p193, %p194
      %p196 = scmp.ne.s32.totalorder %s185, %s186
      %p197 = scmp.eq.s32.totalorder %s25, 0
      %p198 = por %p196, %p197
      %p199 = scmp.ne.s32.totalorder %s185, %s186
      %p200 = scmp.eq.s32.totalorder %s26, 1
      %p201 = por %p199, %p200
      %p203 = scmp.ne.s32.totalorder %s186, %s202
      %p204 = scmp.eq.s32.totalorder %s26, 0
      %p205 = por %p203, %p204
      %p206 = scmp.le.s32.totalorder 1, %s20
      %p207 = scmp.lt.s32.totalorder %s20, 3
      %p208 = pnand %p206, %p207
      %p209 = pneg %p208
      // Predicated region
      $region9: #{tpu_custom_call.1} parent=5 // pred_check
        _
      $region10: #{tpu_custom_call.1} parent=5 // pred_check_branch
        %211 = sbr.rel (%p208) target = $region12
      $region11: #{tpu_custom_call.1} parent=5 // pred_region
        %s212 = ssub.s32 %s20, 1
        // Predicated region
        $region13: #{tpu_custom_call.1} parent=11 // pred_check
          %p213 = pneg %p81
        $region14: #{tpu_custom_call.1} parent=11 // pred_check_branch
          %215 = sbr.rel (%p213) target = $region16
        $region15: #{tpu_custom_call.1} parent=11 // pred_region
          %217 = vsyncadd [#allocation6], 0
          %s218 = sshll.u32 %s1, 4
          %s219 = int_to_ptr.hbm [resolvable:$true] %s218
          %s220 = sshll.u32 [#allocation5], 4
          %s221 = int_to_ptr.vmem [resolvable:$true] %s220
          %226 = dma.hbm_to_vmem [thread:$0]  %s219, 128, %s221, [#allocation6], 64, 64, 4
        $region16: #{tpu_custom_call.1} parent=11 // pred_fallthru
          _
        // Predicated region
        $region17: #{tpu_custom_call.1} parent=11 // pred_check
          %p227 = pneg %p102
        $region18: #{tpu_custom_call.1} parent=11 // pred_check_branch
          %229 = sbr.rel (%p227) target = $region20
        $region19: #{tpu_custom_call.1} parent=11 // pred_region
          _
        $region20: #{tpu_custom_call.1} parent=11 // pred_fallthru
          _
        // Predicated region
        $region21: #{tpu_custom_call.1} parent=11 // pred_check
          %p230 = pneg %p123
        $region22: #{tpu_custom_call.1} parent=11 // pred_check_branch
          %232 = sbr.rel (%p230) target = $region24
        $region23: #{tpu_custom_call.1} parent=11 // pred_region
          %234 = vsyncadd [#allocation6], 0
          %s235 = sshll.u32 %s3, 4
          %s236 = int_to_ptr.hbm [resolvable:$true] %s235
          %s237 = sshll.u32 [#allocation7], 4
          %s238 = int_to_ptr.vmem [resolvable:$true] %s237
          %243 = dma.hbm_to_vmem [thread:$0]  %s236, 256, %s238, [#allocation6], 64, 64, 4
        $region24: #{tpu_custom_call.1} parent=11 // pred_fallthru
          _
        // Predicated region
        $region25: #{tpu_custom_call.1} parent=11 // pred_check
          %p244 = pneg %p144
        $region26: #{tpu_custom_call.1} parent=11 // pred_check_branch
          %246 = sbr.rel (%p244) target = $region28
        $region27: #{tpu_custom_call.1} parent=11 // pred_region
          _
        $region28: #{tpu_custom_call.1} parent=11 // pred_fallthru
          _
        // Predicated region
        $region29: #{tpu_custom_call.1} parent=11 // pred_check
          %p247 = pneg %p170
        $region30: #{tpu_custom_call.1} parent=11 // pred_check_branch
          %249 = sbr.rel (%p247) target = $region32
        $region31: #{tpu_custom_call.1} parent=11 // pred_region
          %251 = vsyncadd [#allocation9], 0
          %s252 = smul.addr %s30, 8
          %s253 = scalar_lea.hbm %s5, %s252
          %s255 = sshll.u32 %s253, 4
          %s256 = int_to_ptr.hbm [resolvable:$true] %s255
          %s257 = sshll.u32 [#allocation8], 4
          %s258 = int_to_ptr.vmem [resolvable:$true] %s257
          %260 = dma.hbm_to_vmem [thread:$0]  %s256, 128, %s258, [#allocation9]
        $region32: #{tpu_custom_call.1} parent=11 // pred_fallthru
          _
      $region12: #{tpu_custom_call.1} parent=5 // pred_fallthru
        _
      %p261 = scmp.lt.s32.totalorder %s20, 2
      // Predicated region
      $region33: #{tpu_custom_call.1} parent=5 // pred_check
        %p262 = pneg %p261
      $region34: #{tpu_custom_call.1} parent=5 // pred_check_branch
        %264 = sbr.rel (%p262) target = $region36
      $region35: #{tpu_custom_call.1} parent=5 // pred_region
        // Predicated region
        $region37: #{tpu_custom_call.1} parent=35 // pred_check
          %p265 = pneg %p54
        $region38: #{tpu_custom_call.1} parent=35 // pred_check_branch
          %267 = sbr.rel (%p265) target = $region40
        $region39: #{tpu_custom_call.1} parent=35 // pred_region
          %s268 = sand.u32 %s44, 1
          %s269 = scalar_lea.sflag [#allocation3], %s268
          %s270 = sand.u32 %s44, 1
          %s271 = smul.addr %s270, 8
          %s272 = scalar_lea.vmem [#allocation2], %s271
          %274 = vsyncadd %s269, 0
          %s275 = sadd.s32 %s28, %s27
          %s276 = smul.addr %s275, 8
          %s277 = scalar_lea.hbm %s0, %s276
          %s279 = sshll.u32 %s277, 4
          %s280 = int_to_ptr.hbm [resolvable:$true] %s279
          %s281 = sshll.u32 %s272, 4
          %s282 = int_to_ptr.vmem [resolvable:$true] %s281
          %284 = dma.hbm_to_vmem [thread:$0]  %s280, 128, %s282, %s269
        $region40: #{tpu_custom_call.1} parent=35 // pred_fallthru
          _
      $region36: #{tpu_custom_call.1} parent=5 // pred_fallthru
        _
      %p285 = scmp.le.s32.totalorder 1, %s20
      %p286 = scmp.lt.s32.totalorder %s20, 3
      %p287 = pnand %p285, %p286
      %p288 = pneg %p287
      // Predicated region
      $region41: #{tpu_custom_call.1} parent=5 // pred_check
        _
      $region42: #{tpu_custom_call.1} parent=5 // pred_check_branch
        %290 = sbr.rel (%p287) target = $region44
      $region43: #{tpu_custom_call.1} parent=5 // pred_region
        %s291 = ssub.s32 %s20, 1
        %s292 = sand.u32 %s47, 1
        %s293 = scalar_lea.sflag [#allocation3], %s292
        %s294 = sand.u32 %s47, 1
        %s295 = smul.addr %s294, 8
        %s296 = scalar_lea.vmem [#allocation2], %s295
        // Predicated region
        $region45: #{tpu_custom_call.1} parent=43 // pred_check
          %p297 = pneg %p60
        $region46: #{tpu_custom_call.1} parent=43 // pred_check_branch
          %299 = sbr.rel (%p297) target = $region48
        $region47: #{tpu_custom_call.1} parent=43 // pred_region
          %301 = dma.done %s293, 128
        $region48: #{tpu_custom_call.1} parent=43 // pred_fallthru
          _
        // Predicated region
        $region49: #{tpu_custom_call.1} parent=43 // pred_check
          %p302 = pneg %p81
        $region50: #{tpu_custom_call.1} parent=43 // pred_check_branch
          %304 = sbr.rel (%p302) target = $region52
        $region51: #{tpu_custom_call.1} parent=43 // pred_region
          %306 = dma.done [#allocation6], 128
        $region52: #{tpu_custom_call.1} parent=43 // pred_fallthru
          _
        // Predicated region
        $region53: #{tpu_custom_call.1} parent=43 // pred_check
          %p307 = pneg %p123
        $region54: #{tpu_custom_call.1} parent=43 // pred_check_branch
          %309 = sbr.rel (%p307) target = $region56
        $region55: #{tpu_custom_call.1} parent=43 // pred_region
          %311 = dma.done [#allocation6], 256
        $region56: #{tpu_custom_call.1} parent=43 // pred_fallthru
          _
        // Predicated region
        $region57: #{tpu_custom_call.1} parent=43 // pred_check
          %p312 = pneg %p170
        $region58: #{tpu_custom_call.1} parent=43 // pred_check_branch
          %314 = sbr.rel (%p312) target = $region60
        $region59: #{tpu_custom_call.1} parent=43 // pred_region
          %316 = dma.done [#allocation9], 128
        $region60: #{tpu_custom_call.1} parent=43 // pred_fallthru
          _
        %s317 = sand.u32 %s47, 1
        %s318 = scalar_lea.sflag [#allocation3], %s317
        %s319 = sand.u32 %s47, 1
        %s320 = smul.addr %s319, 8
        %s321 = scalar_lea.vmem [#allocation2], %s320
        %p322 = pneg %p60
        %p323 = pneg %p57
        %p324 = pneg %p81
        %p325 = pneg %p78
        %p326 = pneg %p102
        %p327 = pneg %p99
        %p328 = pneg %p123
        %p329 = pneg %p120
        %p330 = pneg %p144
        %p331 = pneg %p141
        %p332 = pneg %p170
        %p333 = pneg %p167
        %p334 = pneg %p198
        %p335 = pneg %p195
        %s336 = sand.u32 %s185, 1
        %s337 = scalar_lea.sflag [#allocation4], %s336
        %s338 = sand.u32 %s185, 1
        %s339 = smul.addr %s338, 4
        %s340 = scalar_lea.vmem [#allocation10], %s339
        %v342 = vld [vmem:[%s296] sm:$0xff]
        %v343 = vpack.c.bf16 %v342, %v342
        %v344 = vld [vmem:[#allocation5] sm:$0xf]
        %v345 = vld [vmem:[#allocation5 + $0x4] sm:$0xf]
        %v346 = vld [vmem:[%s2] sm:$0x1]
        %v348 = vperm.slane %v346, 0
        %v352 = vunpack.c.l.b16 %v344
        %v353 = vunpack.c.l.b16 %v345
        %v354 = vpack.c.b16 %v353, %v352
        %vm356 = vcmask 130048
        %v358 = vsel %vm356, %v343, 0
        %360 = vmatpush.bf16.msra.mxu0 0
        %361 = vmatpush.bf16.msra.mxu0 0
        %362 = vmatpush.bf16.msra.mxu0 0
        %363 = vmatpush.bf16.msra.mxu0 0
        %364 = vmatpush.bf16.msra.mxu0 0
        %365 = vmatpush.bf16.msra.mxu0 0
        %366 = vmatpush.bf16.msra.mxu0 0
        %367 = vmatpush.bf16.msra.mxu0 %v354
        %368 = vmatmul.bf16.gmra.mxu0 %v358
        %v369 = vpop.f32.mrf.mxu0
        %v370 = vadd.f32 %v348, %v369
        %v371 = vpop.f32.mrf.mxu0
        %372 = vdwg.mxu0
        %v373 = vmax.f32 %v370, 0.0
        %v374 = vpack.c.bf16 %v373, %v373
        %v375 = vld [vmem:[#allocation7] sm:$0xf]
        %v376 = vld [vmem:[#allocation7 + $0x4] sm:$0xf]
        %v377 = vld [vmem:[#allocation7 + $0x8] sm:$0xf]
        %v378 = vld [vmem:[#allocation7 + $0xc] sm:$0xf]
        %v379 = vld [vmem:[%s4] sm:$0x1]
        %v381 = vperm.slane %v379, 0
        %v387 = vunpack.c.l.b16 %v375
        %v388 = vunpack.c.l.b16 %v376
        %v389 = vunpack.c.l.b16 %v377
        %v390 = vunpack.c.l.b16 %v378
        %v391 = vpack.c.b16 %v388, %v387
        %v392 = vpack.c.b16 %v390, %v389
        %vm395 = vcmask 261120
        %v397 = vsel %vm395, %v374, 0
        %399 = vmatpush.bf16.msra.mxu0 0
        %400 = vmatpush.bf16.msra.mxu0 0
        %401 = vmatpush.bf16.msra.mxu0 0
        %402 = vmatpush.bf16.msra.mxu0 0
        %403 = vmatpush.bf16.msra.mxu0 0
        %404 = vmatpush.bf16.msra.mxu0 0
        %405 = vmatpush.bf16.msra.mxu0 %v392
        %406 = vmatpush.bf16.msra.mxu0 %v391
        %407 = vmatmul.bf16.gmra.mxu0 %v397
        %v408 = vpop.f32.mrf.mxu0
        %v409 = vadd.f32 %v381, %v408
        %v410 = vpop.f32.mrf.mxu0
        %411 = vdwg.mxu0
        %v412 = vmax.f32 %v409, 0.0
        %v413 = vld [vmem:[#allocation8] sm:$0xff]
        %v414 = vadd.f32 %v412, %v413
        %v415 = vpack.c.bf16 %v414, %v414
        %vm416 = vcmask 257024
        %417 = vst.msk [vmem:[%s340] sm:$0xf] %vm416, %v415
        %s418 = sand.u32 %s185, 1
        %s419 = scalar_lea.sflag [#allocation4], %s418
        %s420 = sand.u32 %s185, 1
        %s421 = smul.addr %s420, 4
        %s422 = scalar_lea.vmem [#allocation10], %s421
        // Predicated region
        $region61: #{tpu_custom_call.1} parent=43 // pred_check
          %p423 = pneg %p195
        $region62: #{tpu_custom_call.1} parent=43 // pred_check_branch
          %425 = sbr.rel (%p423) target = $region64
        $region63: #{tpu_custom_call.1} parent=43 // pred_region
          %427 = vsyncadd %s419, 0
          %s428 = sadd.s32 %s30, %s29
          %s429 = smul.addr %s428, 4
          %s430 = scalar_lea.hbm %s6, %s429
          %s432 = sshll.u32 %s422, 4
          %s433 = int_to_ptr.vmem [resolvable:$true] %s432
          %s434 = sshll.u32 %s430, 4
          %s435 = int_to_ptr.hbm [resolvable:$true] %s434
          %437 = dma.vmem_to_hbm [thread:$0]  %s433, 64, %s435, %s419
        $region64: #{tpu_custom_call.1} parent=43 // pred_fallthru
          _
      $region44: #{tpu_custom_call.1} parent=5 // pred_fallthru
        _
      %p438 = scmp.le.s32.totalorder 2, %s20
      // Predicated region
      $region65: #{tpu_custom_call.1} parent=5 // pred_check
        %p439 = pneg %p438
      $region66: #{tpu_custom_call.1} parent=5 // pred_check_branch
        %441 = sbr.rel (%p439) target = $region68
      $region67: #{tpu_custom_call.1} parent=5 // pred_region
        %s442 = ssub.s32 %s20, 2
        // Predicated region
        $region69: #{tpu_custom_call.1} parent=67 // pred_check
          %p443 = pneg %p201
        $region70: #{tpu_custom_call.1} parent=67 // pred_check_branch
          %445 = sbr.rel (%p443) target = $region72
        $region71: #{tpu_custom_call.1} parent=67 // pred_region
          %s446 = sand.u32 %s186, 1
          %s447 = scalar_lea.sflag [#allocation4], %s446
          %s448 = sand.u32 %s186, 1
          %s449 = smul.addr %s448, 4
          %s450 = scalar_lea.vmem [#allocation10], %s449
          %452 = dma.done %s447, 64
        $region72: #{tpu_custom_call.1} parent=67 // pred_fallthru
          _
      $region68: #{tpu_custom_call.1} parent=5 // pred_fallthru
        _
    $region6: #{tpu_custom_call.1} parent=1 // loop_footer
      %s24 = sadd.s32 1, %s20
    $region7: #{tpu_custom_call.1} parent=1 // loop_footer_branch
      %19 = sbr.rel target = $region3
    $region8: #{tpu_custom_call.1} parent=1 // loop_exit
      _
    %453 = vsyncpa [#allocation3], 1
    %s454 = scalar_lea.sflag [#allocation3], 1
    %455 = vsyncpa %s454, 1
    %456 = vsyncpa [#allocation6], 1
    %457 = vsyncpa [#allocation9], 1
    %458 = vsyncpa [#allocation4], 1
    %s459 = scalar_lea.sflag [#allocation4], 1
    %460 = vsyncpa %s459, 1

</llo_original>
